<compile_context>
chip_gen: v6e
topology: v6e:2x2x1
jax: 0.10.0
libtpu: 0.0.40
codegen_flags: <defaults>
</compile_context>

<pallas_src>
from functools import partial

import jax
import jax.numpy as jnp
from jax.experimental import pallas as pl
from jax.experimental.pallas import tpu as pltpu

HIDDEN = 64
IN_DIM = 2
OUT_DIM = 3
OUT_ROWS = 8                    # u, v, p + 5 zero rows -> sublane-aligned tile
N_HIDDEN_LAYERS = 4
TOTAL_PARAMS = (IN_DIM * HIDDEN + HIDDEN) \
    + N_HIDDEN_LAYERS * (HIDDEN * HIDDEN + HIDDEN) \
    + (HIDDEN * OUT_DIM + OUT_DIM)          # = 17027


def _cdiv(a, b):
    return -(-a // b)


def _default_act_dtype():
    """bf16 tanh/MXU path pays off on v6e/v7x; v5e (and older) keep f32."""
    try:
        kind = jax.devices()[0].device_kind.lower()
    except Exception:
        return jnp.float32
    if any(tag in kind for tag in ("v6", "v7", "7x", "trillium")):
        return jnp.bfloat16
    return jnp.float32


def _mlp_kernel(xT_ref, w1_ref, b1_ref, wh_ref, bh_ref, wo_ref, bo_ref, out_ref,
                *, act_dtype):
    """One batch tile, transposed dataflow: h^T is [64, tm] (hidden on
    sublanes, batch on lanes) so every tanh / add is lane-dense and the output
    is a small lane-dense (8, tm) slab."""
    xT = xT_ref[...]                                    # [2, tm]   f32
    w1 = w1_ref[...]                                    # [64, 2]   f32

    # Layer 1 (K=2) on the VPU: two broadcast FMAs instead of a degenerate,
    # lane-sparse MXU matmul.  [64,1] * [1,tm] -> [64,tm].
    z = (w1[:, 0:1] * xT[0:1, :]
         + w1[:, 1:2] * xT[1:2, :]
         + b1_ref[...])                                 # [64, tm]  f32
    h = jnp.tanh(z.astype(act_dtype))

    # 4 hidden layers on the MXU: z^T = W @ h^T (PyTorch W is [out, in], so no
    # transpose needed).  f32 accumulation, f32 bias, tanh in act_dtype.
    for l in range(N_HIDDEN_LAYERS):                    # static unroll
        z = jnp.dot(wh_ref[l], h, preferred_element_type=jnp.float32) + bh_ref[l]
        h = jnp.tanh(z.astype(act_dtype))

    # Output layer: Wo/bo zero-padded from 3 to 8 rows -> (8, tm) lane-dense
    # unmasked store (32 B of writeback per batch row instead of 512 B).
    out_ref[...] = (
        jnp.dot(wo_ref[...], h, preferred_element_type=jnp.float32) + bo_ref[...]
    ).astype(out_ref.dtype)


def prepare_weights(lora_weights, act_dtype=jnp.float32):
    """Unpack + lay out the flat parameter vector for the kernel.
    Hoist / cache this when the same lora_weights serve many x batches."""
    w = lora_weights[0].astype(jnp.float32)
    w1 = w[:128].reshape(HIDDEN, IN_DIM)                      # [64, 2] (out, in)
    b1 = w[128:192].reshape(HIDDEN, 1)                        # [64, 1]
    i = 2 * HIDDEN + HIDDEN
    whs, bhs = [], []
    for _ in range(N_HIDDEN_LAYERS):
        whs.append(w[i:i + HIDDEN * HIDDEN].reshape(HIDDEN, HIDDEN))
        bhs.append(w[i + HIDDEN * HIDDEN:i + HIDDEN * HIDDEN + HIDDEN]
                   .reshape(HIDDEN, 1))
        i += HIDDEN * (HIDDEN + 1)
    wo = w[i:i + HIDDEN * OUT_DIM].reshape(OUT_DIM, HIDDEN)   # [3, 64]
    bo = w[i + HIDDEN * OUT_DIM:i + HIDDEN * OUT_DIM + OUT_DIM]

    wh = jnp.stack(whs).astype(act_dtype)                     # [4, 64, 64]
    bh = jnp.stack(bhs)                                       # [4, 64, 1] f32
    wo_pad = jnp.zeros((OUT_ROWS, HIDDEN), jnp.float32).at[:OUT_DIM].set(wo)
    wo_pad = wo_pad.astype(act_dtype)                         # [8, 64]
    bo_pad = jnp.zeros((OUT_ROWS, 1), jnp.float32).at[:OUT_DIM, 0].set(bo)
    return w1, b1, wh, bh, wo_pad, bo_pad


def _choose_tile(n, tm_max):
    """Batch lives on the lane axis, so tiles are 128-granular.  Pick the step
    count first (>= 2 and even for large batches so ("parallel",) splits
    evenly across v7x's two TensorCores), then derive tm so padding stays
    bounded by ~steps * 128 rows."""
    n128 = _cdiv(n, 128) * 128
    steps = _cdiv(n128, tm_max)
    if steps == 1 and n128 >= 2048:
        steps = 2
    if steps > 1 and steps % 2:
        steps += 1
    tm = _cdiv(_cdiv(n128, steps), 128) * 128
    return tm, steps * tm


def _apply_mlp(params, x, *, tm_max, act_dtype):
    w1, b1, wh, bh, wo, bo = params
    n = x.shape[0]
    tm, n_pad = _choose_tile(n, tm_max)

    # Transposed, lane-dense input: (2, n_pad) -> contiguous HBM reads per tile.
    xT = x.astype(jnp.float32).T
    if n_pad != n:
        xT = jnp.pad(xT, ((0, 0), (0, n_pad - n)))

    out = pl.pallas_call(
        partial(_mlp_kernel, act_dtype=act_dtype),
        out_shape=jax.ShapeDtypeStruct((OUT_ROWS, n_pad), jnp.float32),
        grid_spec=pltpu.PrefetchScalarGridSpec(
            num_scalar_prefetch=0,
            grid=(n_pad // tm,),
            in_specs=[
                pl.BlockSpec((IN_DIM, tm), lambda i: (0, i)),
                pl.BlockSpec((HIDDEN, IN_DIM), lambda i: (0, 0)),
                pl.BlockSpec((HIDDEN, 1), lambda i: (0, 0)),
                pl.BlockSpec((N_HIDDEN_LAYERS, HIDDEN, HIDDEN),
                             lambda i: (0, 0, 0)),
                pl.BlockSpec((N_HIDDEN_LAYERS, HIDDEN, 1),
                             lambda i: (0, 0, 0)),
                pl.BlockSpec((OUT_ROWS, HIDDEN), lambda i: (0, 0)),
                pl.BlockSpec((OUT_ROWS, 1), lambda i: (0, 0)),
            ],
            out_specs=pl.BlockSpec((OUT_ROWS, tm), lambda i: (0, i)),
        ),
        compiler_params=pltpu.CompilerParams(
            dimension_semantics=("parallel",)),
    )(xT, w1, b1, wh, bh, wo, bo)

    # Three contiguous row reads (cheap) instead of three strided column slices.
    u = out[0, :n][:, None]
    v = out[1, :n][:, None]
    p = out[2, :n][:, None]
    return u, v, p


def main_model_dnn_forward(original_weights, lora_weights, x, *,
                           tm=2048, act_dtype=None):
    del original_weights            # unused by the reference forward
    if act_dtype is None:
        act_dtype = _default_act_dtype()
    params = prepare_weights(lora_weights, act_dtype)
    return _apply_mlp(params, x, tm_max=tm, act_dtype=act_dtype)


def _reference_forward(lora_weights, x):
    # Pure-JAX replica of the PyTorch forward (F.linear uses W of shape [out, in]).
    w = lora_weights[0]
    i = 2 * 64 + 64
    h = jnp.tanh(x @ w[:128].reshape(64, 2).T + w[128:192])
    for _ in range(4):
        W = w[i:i + 64 * 64].reshape(64, 64)
        b = w[i + 64 * 64:i + 64 * 64 + 64]
        h = jnp.tanh(h @ W.T + b)
        i += 64 * 65
    W = w[i:i + 64 * 3].reshape(3, 64)
    b = w[i + 64 * 3:i + 64 * 3 + 3]
    h = h @ W.T + b
    return h[:, 0:1], h[:, 1:2], h[:, 2:3]


if __name__ == "__main__":
    key = jax.random.PRNGKey(0)
    k1, k2, k3, k4 = jax.random.split(key, 4)

    lora_weights = 0.1 * jax.random.normal(k2, (1, TOTAL_PARAMS), jnp.float32)
    original_weights = 0.1 * jax.random.normal(k3, (1, TOTAL_PARAMS), jnp.float32)  # unused

    def check(x, act_dtype, tol):
        u, v, p = main_model_dnn_forward(original_weights, lora_weights, x,
                                         act_dtype=act_dtype)
        jax.block_until_ready((u, v, p))
        u_r, v_r, p_r = _reference_forward(lora_weights, x)
        n = x.shape[0]
        assert u.shape == (n, 1) and v.shape == (n, 1) and p.shape == (n, 1)
        assert jnp.allclose(u, u_r, atol=tol, rtol=tol)
        assert jnp.allclose(v, v_r, atol=tol, rtol=tol)
        assert jnp.allclose(p, p_r, atol=tol, rtol=tol)

    # Small case (strict f32 check on every generation): matches the
    # np.linspace(-0.5, 1.0, 101) granularity in the source.  Single-step grid.
    N = 101
    x = jax.random.uniform(k1, (N, IN_DIM), jnp.float32, minval=-0.5, maxval=1.0)
    check(x, jnp.float32, 1e-5)

    # Larger case: exercises lane padding + a multi-step grid with an even
    # number of steps (both v7x TensorCores busy), still strict f32.
    N2 = 5000
    x2 = jax.random.uniform(k4, (N2, IN_DIM), jnp.float32, minval=-0.5, maxval=1.0)
    check(x2, jnp.float32, 1e-5)

    # Generation-tuned path: bf16 tanh / MXU operands on v6e/v7x (~2x on the
    # binding EUP/MXU slots), checked at relaxed tolerance.  v5e stays f32.
    auto_dtype = _default_act_dtype()
    if auto_dtype != jnp.float32:
        check(x2, auto_dtype, 2e-2)

    print("KERNEL_OK")
</pallas_src>

<mosaic_0001>
module attributes {stable_mosaic.version = 11 : i64} {
  func.func @_mlp_kernel(%arg0: i32, %arg1: memref<2x128xf32, #tpu.memory_space<vmem>>, %arg2: memref<64x2xf32, #tpu.memory_space<vmem>>, %arg3: memref<64x1xf32, #tpu.memory_space<vmem>>, %arg4: memref<4x64x64xf32, #tpu.memory_space<vmem>>, %arg5: memref<4x64x1xf32, #tpu.memory_space<vmem>>, %arg6: memref<8x64xf32, #tpu.memory_space<vmem>>, %arg7: memref<8x1xf32, #tpu.memory_space<vmem>>, %arg8: memref<8x128xf32, #tpu.memory_space<vmem>>) attributes {dimension_semantics = [#tpu.dimension_semantics<parallel>], iteration_bounds = array<i64: 1>, scalar_prefetch = 0 : i64, scratch_operands = 0 : i64, tpu.core_type = #tpu.core_type<tc>, window_params = [{transform_indices = @transform_0, window_bounds = array<i64: 2, 128>}, {pipeline_mode = #tpu.pipeline_mode<synchronous>, transform_indices = @transform_1, window_bounds = array<i64: 64, 2>}, {pipeline_mode = #tpu.pipeline_mode<synchronous>, transform_indices = @transform_2, window_bounds = array<i64: 64, 1>}, {pipeline_mode = #tpu.pipeline_mode<synchronous>, transform_indices = @transform_3, window_bounds = array<i64: 4, 64, 64>}, {pipeline_mode = #tpu.pipeline_mode<synchronous>, transform_indices = @transform_4, window_bounds = array<i64: 4, 64, 1>}, {pipeline_mode = #tpu.pipeline_mode<synchronous>, transform_indices = @transform_5, window_bounds = array<i64: 8, 64>}, {pipeline_mode = #tpu.pipeline_mode<synchronous>, transform_indices = @transform_6, window_bounds = array<i64: 8, 1>}, {transform_indices = @transform_7, window_bounds = array<i64: 8, 128>}]} {
    %c0 = arith.constant 0 : index
    %c0_0 = arith.constant 0 : index
    %0 = vector.load %arg1[%c0, %c0_0] : memref<2x128xf32, #tpu.memory_space<vmem>>, vector<2x128xf32>
    %c0_1 = arith.constant 0 : index
    %c0_2 = arith.constant 0 : index
    %1 = vector.load %arg2[%c0_1, %c0_2] : memref<64x2xf32, #tpu.memory_space<vmem>>, vector<64x2xf32>
    %2 = vector.extract_strided_slice %1 {offsets = [0, 0], sizes = [64, 1], strides = [1, 1]} : vector<64x2xf32> to vector<64x1xf32>
    %3 = vector.extract_strided_slice %0 {offsets = [0, 0], sizes = [1, 128], strides = [1, 1]} : vector<2x128xf32> to vector<1x128xf32>
    %4 = vector.broadcast %2 : vector<64x1xf32> to vector<64x128xf32>
    %5 = vector.broadcast %3 : vector<1x128xf32> to vector<64x128xf32>
    %6 = arith.mulf %4, %5 : vector<64x128xf32>
    %7 = vector.extract_strided_slice %1 {offsets = [0, 1], sizes = [64, 1], strides = [1, 1]} : vector<64x2xf32> to vector<64x1xf32>
    %8 = vector.extract_strided_slice %0 {offsets = [1, 0], sizes = [1, 128], strides = [1, 1]} : vector<2x128xf32> to vector<1x128xf32>
    %9 = vector.broadcast %7 : vector<64x1xf32> to vector<64x128xf32>
    %10 = vector.broadcast %8 : vector<1x128xf32> to vector<64x128xf32>
    %11 = arith.mulf %9, %10 : vector<64x128xf32>
    %12 = arith.addf %6, %11 : vector<64x128xf32>
    %c0_3 = arith.constant 0 : index
    %c0_4 = arith.constant 0 : index
    %13 = vector.load %arg3[%c0_3, %c0_4] : memref<64x1xf32, #tpu.memory_space<vmem>>, vector<64x1xf32>
    %14 = vector.broadcast %13 : vector<64x1xf32> to vector<64x128xf32>
    %15 = arith.addf %12, %14 : vector<64x128xf32>
    %16 = math.tanh %15 : vector<64x128xf32>
    %c0_5 = arith.constant 0 : index
    %c0_6 = arith.constant 0 : index
    %c0_7 = arith.constant 0 : index
    %17 = vector.load %arg4[%c0_5, %c0_6, %c0_7] : memref<4x64x64xf32, #tpu.memory_space<vmem>>, vector<1x64x64xf32>
    %18 = vector.shape_cast %17 : vector<1x64x64xf32> to vector<64x64xf32>
    %cst = arith.constant dense<0.000000e+00> : vector<64x128xf32>
    %19 = tpu.matmul %18, %16, %cst {dimension_numbers = #tpu.dot_dimension_numbers<[1], [0], [0], [1], [0, 0, 1, 1], [], []>} : vector<64x64xf32>, vector<64x128xf32>, vector<64x128xf32> -> vector<64x128xf32>
    %c0_8 = arith.constant 0 : index
    %c0_9 = arith.constant 0 : index
    %c0_10 = arith.constant 0 : index
    %20 = vector.load %arg5[%c0_8, %c0_9, %c0_10] : memref<4x64x1xf32, #tpu.memory_space<vmem>>, vector<1x64x1xf32>
    %21 = vector.shape_cast %20 : vector<1x64x1xf32> to vector<64x1xf32>
    %22 = vector.broadcast %21 : vector<64x1xf32> to vector<64x128xf32>
    %23 = arith.addf %19, %22 : vector<64x128xf32>
    %24 = math.tanh %23 : vector<64x128xf32>
    %c1 = arith.constant 1 : index
    %c0_11 = arith.constant 0 : index
    %c0_12 = arith.constant 0 : index
    %25 = vector.load %arg4[%c1, %c0_11, %c0_12] : memref<4x64x64xf32, #tpu.memory_space<vmem>>, vector<1x64x64xf32>
    %26 = vector.shape_cast %25 : vector<1x64x64xf32> to vector<64x64xf32>
    %cst_13 = arith.constant dense<0.000000e+00> : vector<64x128xf32>
    %27 = tpu.matmul %26, %24, %cst_13 {dimension_numbers = #tpu.dot_dimension_numbers<[1], [0], [0], [1], [0, 0, 1, 1], [], []>} : vector<64x64xf32>, vector<64x128xf32>, vector<64x128xf32> -> vector<64x128xf32>
    %c1_14 = arith.constant 1 : index
    %c0_15 = arith.constant 0 : index
    %c0_16 = arith.constant 0 : index
    %28 = vector.load %arg5[%c1_14, %c0_15, %c0_16] : memref<4x64x1xf32, #tpu.memory_space<vmem>>, vector<1x64x1xf32>
    %29 = vector.shape_cast %28 : vector<1x64x1xf32> to vector<64x1xf32>
    %30 = vector.broadcast %29 : vector<64x1xf32> to vector<64x128xf32>
    %31 = arith.addf %27, %30 : vector<64x128xf32>
    %32 = math.tanh %31 : vector<64x128xf32>
    %c2 = arith.constant 2 : index
    %c0_17 = arith.constant 0 : index
    %c0_18 = arith.constant 0 : index
    %33 = vector.load %arg4[%c2, %c0_17, %c0_18] : memref<4x64x64xf32, #tpu.memory_space<vmem>>, vector<1x64x64xf32>
    %34 = vector.shape_cast %33 : vector<1x64x64xf32> to vector<64x64xf32>
    %cst_19 = arith.constant dense<0.000000e+00> : vector<64x128xf32>
    %35 = tpu.matmul %34, %32, %cst_19 {dimension_numbers = #tpu.dot_dimension_numbers<[1], [0], [0], [1], [0, 0, 1, 1], [], []>} : vector<64x64xf32>, vector<64x128xf32>, vector<64x128xf32> -> vector<64x128xf32>
    %c2_20 = arith.constant 2 : index
    %c0_21 = arith.constant 0 : index
    %c0_22 = arith.constant 0 : index
    %36 = vector.load %arg5[%c2_20, %c0_21, %c0_22] : memref<4x64x1xf32, #tpu.memory_space<vmem>>, vector<1x64x1xf32>
    %37 = vector.shape_cast %36 : vector<1x64x1xf32> to vector<64x1xf32>
    %38 = vector.broadcast %37 : vector<64x1xf32> to vector<64x128xf32>
    %39 = arith.addf %35, %38 : vector<64x128xf32>
    %40 = math.tanh %39 : vector<64x128xf32>
    %c3 = arith.constant 3 : index
    %c0_23 = arith.constant 0 : index
    %c0_24 = arith.constant 0 : index
    %41 = vector.load %arg4[%c3, %c0_23, %c0_24] : memref<4x64x64xf32, #tpu.memory_space<vmem>>, vector<1x64x64xf32>
    %42 = vector.shape_cast %41 : vector<1x64x64xf32> to vector<64x64xf32>
    %cst_25 = arith.constant dense<0.000000e+00> : vector<64x128xf32>
    %43 = tpu.matmul %42, %40, %cst_25 {dimension_numbers = #tpu.dot_dimension_numbers<[1], [0], [0], [1], [0, 0, 1, 1], [], []>} : vector<64x64xf32>, vector<64x128xf32>, vector<64x128xf32> -> vector<64x128xf32>
    %c3_26 = arith.constant 3 : index
    %c0_27 = arith.constant 0 : index
    %c0_28 = arith.constant 0 : index
    %44 = vector.load %arg5[%c3_26, %c0_27, %c0_28] : memref<4x64x1xf32, #tpu.memory_space<vmem>>, vector<1x64x1xf32>
    %45 = vector.shape_cast %44 : vector<1x64x1xf32> to vector<64x1xf32>
    %46 = vector.broadcast %45 : vector<64x1xf32> to vector<64x128xf32>
    %47 = arith.addf %43, %46 : vector<64x128xf32>
    %48 = math.tanh %47 : vector<64x128xf32>
    %c0_29 = arith.constant 0 : index
    %c0_30 = arith.constant 0 : index
    %49 = vector.load %arg6[%c0_29, %c0_30] : memref<8x64xf32, #tpu.memory_space<vmem>>, vector<8x64xf32>
    %cst_31 = arith.constant dense<0.000000e+00> : vector<8x128xf32>
    %50 = tpu.matmul %49, %48, %cst_31 {dimension_numbers = #tpu.dot_dimension_numbers<[1], [0], [0], [1], [0, 0, 1, 1], [], []>} : vector<8x64xf32>, vector<64x128xf32>, vector<8x128xf32> -> vector<8x128xf32>
    %c0_32 = arith.constant 0 : index
    %c0_33 = arith.constant 0 : index
    %51 = vector.load %arg7[%c0_32, %c0_33] : memref<8x1xf32, #tpu.memory_space<vmem>>, vector<8x1xf32>
    %52 = vector.broadcast %51 : vector<8x1xf32> to vector<8x128xf32>
    %53 = arith.addf %50, %52 : vector<8x128xf32>
    %c0_34 = arith.constant 0 : index
    %c0_35 = arith.constant 0 : index
    %54 = vector.load %arg8[%c0_34, %c0_35] : memref<8x128xf32, #tpu.memory_space<vmem>>, vector<8x128xf32>
    tpu.vector_store %arg8[%c0_34, %c0_35], %53 {strides = array<i32>} : memref<8x128xf32, #tpu.memory_space<vmem>>, vector<8x128xf32>,
    return
  }
  func.func @transform_0(%arg0: i32) -> (i32, i32) {
    %c0_i32 = arith.constant 0 : i32
    %c0_i32_0 = arith.constant 0 : i32
    return %c0_i32, %arg0 : i32, i32
  }
  func.func @transform_1(%arg0: i32) -> (i32, i32) {
    %c0_i32 = arith.constant 0 : i32
    %c0_i32_0 = arith.constant 0 : i32
    %c0_i32_1 = arith.constant 0 : i32
    return %c0_i32, %c0_i32_0 : i32, i32
  }
  func.func @transform_2(%arg0: i32) -> (i32, i32) {
    %c0_i32 = arith.constant 0 : i32
    %c0_i32_0 = arith.constant 0 : i32
    %c0_i32_1 = arith.constant 0 : i32
    return %c0_i32, %c0_i32_0 : i32, i32
  }
  func.func @transform_3(%arg0: i32) -> (i32, i32, i32) {
    %c0_i32 = arith.constant 0 : i32
    %c0_i32_0 = arith.constant 0 : i32
    %c0_i32_1 = arith.constant 0 : i32
    %c0_i32_2 = arith.constant 0 : i32
    return %c0_i32, %c0_i32_0, %c0_i32_1 : i32, i32, i32
  }
  func.func @transform_4(%arg0: i32) -> (i32, i32, i32) {
    %c0_i32 = arith.constant 0 : i32
    %c0_i32_0 = arith.constant 0 : i32
    %c0_i32_1 = arith.constant 0 : i32
    %c0_i32_2 = arith.constant 0 : i32
    return %c0_i32, %c0_i32_0, %c0_i32_1 : i32, i32, i32
  }
  func.func @transform_5(%arg0: i32) -> (i32, i32) {
    %c0_i32 = arith.constant 0 : i32
    %c0_i32_0 = arith.constant 0 : i32
    %c0_i32_1 = arith.constant 0 : i32
    return %c0_i32, %c0_i32_0 : i32, i32
  }
  func.func @transform_6(%arg0: i32) -> (i32, i32) {
    %c0_i32 = arith.constant 0 : i32
    %c0_i32_0 = arith.constant 0 : i32
    %c0_i32_1 = arith.constant 0 : i32
    return %c0_i32, %c0_i32_0 : i32, i32
  }
  func.func @transform_7(%arg0: i32) -> (i32, i32) {
    %c0_i32 = arith.constant 0 : i32
    %c0_i32_0 = arith.constant 0 : i32
    return %c0_i32, %arg0 : i32, i32
  }
}

</mosaic_0001>

<llo_original>
// kernel: tpu_custom_call.1
$region0: #{tpu_custom_call.1}
  #allocation0 [shape = 'u32[]', space=smem, size = 0x4, offset = 0x4, fixed_abs, tag = 'smem constant byte address 0x4 - core index']
  #allocation1 [shape = 'u32[144,128]{1,0:T(1,128)}', space=vmem, size = 0x12000, scoped, tag = 'internal scratch']
  %s0 = inlined_call_operand.vmem [shape: f32[2,128], index: 0, kind: input, shape index: {}]
  %s1 = inlined_call_operand.vmem [shape: f32[64,2], index: 1, kind: input, shape index: {}]
  %s2 = inlined_call_operand.vmem [shape: f32[64,1], index: 2, kind: input, shape index: {}]
  %s3 = inlined_call_operand.vmem [shape: f32[4,64,64], index: 3, kind: input, shape index: {}]
  %s4 = inlined_call_operand.vmem [shape: f32[4,64,1], index: 4, kind: input, shape index: {}]
  %s5 = inlined_call_operand.vmem [shape: f32[8,64], index: 5, kind: input, shape index: {}]
  %s6 = inlined_call_operand.vmem [shape: f32[8,1], index: 6, kind: input, shape index: {}]
  %s7 = inlined_call_operand.hbm [shape: f32[8,128], index: 7, kind: output, shape index: {}]
  %s8 = sld [smem:[#allocation0]]
  $region38: #{tpu_custom_call.1} parent=0
    _
  %s10 = ssub.s32 1, %s8
  %s11 = scalar_select 0, %s10, %s8
  $region1: #{tpu_custom_call.1} parent=0
    #allocation2 [shape = 'u8[4096]{0}', space=vmem, size = 0x1000, scoped, tag = 'output window, operand 0, single buffered']
    #allocation3 [shape = 's32[1]{0}', space=sflag, size = 0x4, scoped, tag = 'scoped memory for tpu_custom_call.1']
    %12 = vsyncpa [#allocation3], 0
    // Predicated region
    $region2: #{tpu_custom_call.1} parent=1 // pred_check
      _
    $region3: #{tpu_custom_call.1} parent=1 // pred_check_branch
      %14 = sbr.rel (0) target = $region5
    $region4: #{tpu_custom_call.1} parent=1 // pred_region
      _
    $region5: #{tpu_custom_call.1} parent=1 // pred_fallthru
      _
    // Predicated region
    $region6: #{tpu_custom_call.1} parent=1 // pred_check
      _
    $region7: #{tpu_custom_call.1} parent=1 // pred_check_branch
      %16 = sbr.rel (0) target = $region9
    $region8: #{tpu_custom_call.1} parent=1 // pred_region
      _
    $region9: #{tpu_custom_call.1} parent=1 // pred_fallthru
      _
    // Predicated region
    $region10: #{tpu_custom_call.1} parent=1 // pred_check
      _
    $region11: #{tpu_custom_call.1} parent=1 // pred_check_branch
      %18 = sbr.rel (0) target = $region13
    $region12: #{tpu_custom_call.1} parent=1 // pred_region
      _
    $region13: #{tpu_custom_call.1} parent=1 // pred_fallthru
      _
    // Predicated region
    $region14: #{tpu_custom_call.1} parent=1 // pred_check
      _
    $region15: #{tpu_custom_call.1} parent=1 // pred_check_branch
      %20 = sbr.rel (0) target = $region17
    $region16: #{tpu_custom_call.1} parent=1 // pred_region
      _
    $region17: #{tpu_custom_call.1} parent=1 // pred_fallthru
      _
    // Predicated region
    $region18: #{tpu_custom_call.1} parent=1 // pred_check
      _
    $region19: #{tpu_custom_call.1} parent=1 // pred_check_branch
      %22 = sbr.rel (0) target = $region21
    $region20: #{tpu_custom_call.1} parent=1 // pred_region
      _
    $region21: #{tpu_custom_call.1} parent=1 // pred_fallthru
      _
    // Predicated region
    $region22: #{tpu_custom_call.1} parent=1 // pred_check
      _
    $region23: #{tpu_custom_call.1} parent=1 // pred_check_branch
      %24 = sbr.rel (0) target = $region25
    $region24: #{tpu_custom_call.1} parent=1 // pred_region
      _
    $region25: #{tpu_custom_call.1} parent=1 // pred_fallthru
      _
    // Predicated region
    $region26: #{tpu_custom_call.1} parent=1 // pred_check
      _
    $region27: #{tpu_custom_call.1} parent=1 // pred_check_branch
      %26 = sbr.rel (0) target = $region29
    $region28: #{tpu_custom_call.1} parent=1 // pred_region
      _
    $region29: #{tpu_custom_call.1} parent=1 // pred_fallthru
      _
    %v27 = vld [vmem:[%s0] sm:$0x3]
    %v28 = vld [vmem:[%s1] sm:$0xff]
    %v29 = vld [vmem:[%s1 + $0x8] sm:$0xff]
    %v30 = vld [vmem:[%s1 + $0x10] sm:$0xff]
    %v31 = vld [vmem:[%s1 + $0x18] sm:$0xff]
    %v32 = vld [vmem:[%s1 + $0x20] sm:$0xff]
    %v33 = vld [vmem:[%s1 + $0x28] sm:$0xff]
    %v34 = vld [vmem:[%s1 + $0x30] sm:$0xff]
    %v35 = vld [vmem:[%s1 + $0x38] sm:$0xff]
    %37 = vset.pattern.permute.xlu0 0
    %38 = vperm.xlu0 %37, %v28
    %v39 = vpop.permute.xlu0 %38
    %42 = vset.pattern.permute.xlu0 0
    %43 = vperm.xlu0 %42, %v29
    %v44 = vpop.permute.xlu0 %43
    %47 = vset.pattern.permute.xlu0 0
    %48 = vperm.xlu0 %47, %v30
    %v49 = vpop.permute.xlu0 %48
    %52 = vset.pattern.permute.xlu0 0
    %53 = vperm.xlu0 %52, %v31
    %v54 = vpop.permute.xlu0 %53
    %57 = vset.pattern.permute.xlu0 0
    %58 = vperm.xlu0 %57, %v32
    %v59 = vpop.permute.xlu0 %58
    %62 = vset.pattern.permute.xlu0 0
    %63 = vperm.xlu0 %62, %v33
    %v64 = vpop.permute.xlu0 %63
    %67 = vset.pattern.permute.xlu0 0
    %68 = vperm.xlu0 %67, %v34
    %v69 = vpop.permute.xlu0 %68
    %72 = vset.pattern.permute.xlu0 0
    %73 = vperm.xlu0 %72, %v35
    %v74 = vpop.permute.xlu0 %73
    %v76 = vlaneseq
    %v77 = vshrl.u32 %v76, 7
    %v78 = vsub.s32 0, %v77
    %v79 = vrot.slane %v27, %v78
    %v80 = vmul.f32 %v39, %v79
    %v81 = vmul.f32 %v44, %v79
    %v82 = vmul.f32 %v49, %v79
    %v83 = vmul.f32 %v54, %v79
    %v84 = vmul.f32 %v59, %v79
    %v85 = vmul.f32 %v64, %v79
    %v86 = vmul.f32 %v69, %v79
    %v87 = vmul.f32 %v74, %v79
    %88 = vset.pattern.permute.xlu0 1
    %89 = vperm.xlu0 %88, %v28
    %v90 = vpop.permute.xlu0 %89
    %92 = vset.pattern.permute.xlu0 1
    %93 = vperm.xlu0 %92, %v29
    %v94 = vpop.permute.xlu0 %93
    %96 = vset.pattern.permute.xlu0 1
    %97 = vperm.xlu0 %96, %v30
    %v98 = vpop.permute.xlu0 %97
    %100 = vset.pattern.permute.xlu0 1
    %101 = vperm.xlu0 %100, %v31
    %v102 = vpop.permute.xlu0 %101
    %104 = vset.pattern.permute.xlu0 1
    %105 = vperm.xlu0 %104, %v32
    %v106 = vpop.permute.xlu0 %105
    %108 = vset.pattern.permute.xlu0 1
    %109 = vperm.xlu0 %108, %v33
    %v110 = vpop.permute.xlu0 %109
    %112 = vset.pattern.permute.xlu0 1
    %113 = vperm.xlu0 %112, %v34
    %v114 = vpop.permute.xlu0 %113
    %116 = vset.pattern.permute.xlu0 1
    %117 = vperm.xlu0 %116, %v35
    %v118 = vpop.permute.xlu0 %117
    %v120 = vlaneseq
    %v121 = vshrl.u32 %v120, 7
    %v122 = vsub.s32 1, %v121
    %v123 = vrot.slane %v27, %v122
    %v124 = vmul.f32 %v90, %v123
    %v125 = vmul.f32 %v94, %v123
    %v126 = vmul.f32 %v98, %v123
    %v127 = vmul.f32 %v102, %v123
    %v128 = vmul.f32 %v106, %v123
    %v129 = vmul.f32 %v110, %v123
    %v130 = vmul.f32 %v114, %v123
    %v131 = vmul.f32 %v118, %v123
    %v132 = vadd.f32 %v80, %v124
    %v133 = vadd.f32 %v81, %v125
    %v134 = vadd.f32 %v82, %v126
    %v135 = vadd.f32 %v83, %v127
    %v136 = vadd.f32 %v84, %v128
    %v137 = vadd.f32 %v85, %v129
    %v138 = vadd.f32 %v86, %v130
    %v139 = vadd.f32 %v87, %v131
    %v140 = vld [vmem:[%s2] sm:$0xff]
    %v141 = vld [vmem:[%s2 + $0x8] sm:$0xff]
    %v142 = vld [vmem:[%s2 + $0x10] sm:$0xff]
    %v143 = vld [vmem:[%s2 + $0x18] sm:$0xff]
    %v144 = vld [vmem:[%s2 + $0x20] sm:$0xff]
    %v145 = vld [vmem:[%s2 + $0x28] sm:$0xff]
    %v146 = vld [vmem:[%s2 + $0x30] sm:$0xff]
    %v147 = vld [vmem:[%s2 + $0x38] sm:$0xff]
    %149 = vset.pattern.permute.xlu0 0
    %150 = vperm.xlu0 %149, %v140
    %v151 = vpop.permute.xlu0 %150
    %154 = vset.pattern.permute.xlu0 0
    %155 = vperm.xlu0 %154, %v141
    %v156 = vpop.permute.xlu0 %155
    %159 = vset.pattern.permute.xlu0 0
    %160 = vperm.xlu0 %159, %v142
    %v161 = vpop.permute.xlu0 %160
    %164 = vset.pattern.permute.xlu0 0
    %165 = vperm.xlu0 %164, %v143
    %v166 = vpop.permute.xlu0 %165
    %169 = vset.pattern.permute.xlu0 0
    %170 = vperm.xlu0 %169, %v144
    %v171 = vpop.permute.xlu0 %170
    %174 = vset.pattern.permute.xlu0 0
    %175 = vperm.xlu0 %174, %v145
    %v176 = vpop.permute.xlu0 %175
    %179 = vset.pattern.permute.xlu0 0
    %180 = vperm.xlu0 %179, %v146
    %v181 = vpop.permute.xlu0 %180
    %184 = vset.pattern.permute.xlu0 0
    %185 = vperm.xlu0 %184, %v147
    %v186 = vpop.permute.xlu0 %185
    %v188 = vadd.f32 %v132, %v151
    %v189 = vadd.f32 %v133, %v156
    %v190 = vadd.f32 %v134, %v161
    %v191 = vadd.f32 %v135, %v166
    %v192 = vadd.f32 %v136, %v171
    %v193 = vadd.f32 %v137, %v176
    %v194 = vadd.f32 %v138, %v181
    %v195 = vadd.f32 %v139, %v186
    %v196 = vtanh.pop %v188
    %v197 = vtanh.pop %v189
    %v198 = vtanh.pop %v190
    %v199 = vtanh.pop %v191
    %v200 = vtanh.pop %v192
    %v201 = vtanh.pop %v193
    %v202 = vtanh.pop %v194
    %v203 = vtanh.pop %v195
    %v204 = vld [vmem:[%s3] sm:$0xff]
    %v205 = vld [vmem:[%s3 + $0x8] sm:$0xff]
    %v206 = vld [vmem:[%s3 + $0x10] sm:$0xff]
    %v207 = vld [vmem:[%s3 + $0x18] sm:$0xff]
    %v208 = vld [vmem:[%s3 + $0x20] sm:$0xff]
    %v209 = vld [vmem:[%s3 + $0x28] sm:$0xff]
    %v210 = vld [vmem:[%s3 + $0x30] sm:$0xff]
    %v211 = vld [vmem:[%s3 + $0x38] sm:$0xff]
    %v212 = vld [vmem:[%s4] sm:$0xff]
    %v213 = vld [vmem:[%s4 + $0x8] sm:$0xff]
    %v214 = vld [vmem:[%s4 + $0x10] sm:$0xff]
    %v215 = vld [vmem:[%s4 + $0x18] sm:$0xff]
    %v216 = vld [vmem:[%s4 + $0x20] sm:$0xff]
    %v217 = vld [vmem:[%s4 + $0x28] sm:$0xff]
    %v218 = vld [vmem:[%s4 + $0x30] sm:$0xff]
    %v219 = vld [vmem:[%s4 + $0x38] sm:$0xff]
    %221 = vset.pattern.permute.xlu0 0
    %222 = vperm.xlu0 %221, %v212
    %v223 = vpop.permute.xlu0 %222
    %226 = vset.pattern.permute.xlu0 0
    %227 = vperm.xlu0 %226, %v213
    %v228 = vpop.permute.xlu0 %227
    %231 = vset.pattern.permute.xlu0 0
    %232 = vperm.xlu0 %231, %v214
    %v233 = vpop.permute.xlu0 %232
    %236 = vset.pattern.permute.xlu0 0
    %237 = vperm.xlu0 %236, %v215
    %v238 = vpop.permute.xlu0 %237
    %241 = vset.pattern.permute.xlu0 0
    %242 = vperm.xlu0 %241, %v216
    %v243 = vpop.permute.xlu0 %242
    %246 = vset.pattern.permute.xlu0 0
    %247 = vperm.xlu0 %246, %v217
    %v248 = vpop.permute.xlu0 %247
    %251 = vset.pattern.permute.xlu0 0
    %252 = vperm.xlu0 %251, %v218
    %v253 = vpop.permute.xlu0 %252
    %256 = vset.pattern.permute.xlu0 0
    %257 = vperm.xlu0 %256, %v219
    %v258 = vpop.permute.xlu0 %257
    %vm260 = vcmask 523264
    %v262 = vsel %vm260, %v204, 0
    %v265 = vsel %vm260, %v205, 0
    %v268 = vsel %vm260, %v206, 0
    %v271 = vsel %vm260, %v207, 0
    %v274 = vsel %vm260, %v208, 0
    %v277 = vsel %vm260, %v209, 0
    %v280 = vsel %vm260, %v210, 0
    %v283 = vsel %vm260, %v211, 0
    %285 = vmatprep.subr.mxu0 0.0
    %286 = vmatpush1.msra.mxu0 0.0
    %287 = vmatprep.subr.mxu0 0.0
    %288 = vmatpush1.msra.mxu0 0.0
    %289 = vmatprep.subr.mxu0 0.0
    %290 = vmatpush1.msra.mxu0 0.0
    %291 = vmatprep.subr.mxu0 0.0
    %292 = vmatpush1.msra.mxu0 0.0
    %293 = vmatprep.subr.mxu0 0.0
    %294 = vmatpush1.msra.mxu0 0.0
    %295 = vmatprep.subr.mxu0 0.0
    %296 = vmatpush1.msra.mxu0 0.0
    %297 = vmatprep.subr.mxu0 0.0
    %298 = vmatpush1.msra.mxu0 0.0
    %299 = vmatprep.subr.mxu0 0.0
    %300 = vmatpush1.msra.mxu0 0.0
    %301 = vmatprep.subr.mxu0 0.0
    %302 = vmatpush1.msra.mxu0 %v203
    %303 = vmatprep.subr.mxu0 0.0
    %304 = vmatpush1.msra.mxu0 %v202
    %305 = vmatprep.subr.mxu0 0.0
    %306 = vmatpush1.msra.mxu0 %v201
    %307 = vmatprep.subr.mxu0 0.0
    %308 = vmatpush1.msra.mxu0 %v200
    %309 = vmatprep.subr.mxu0 0.0
    %310 = vmatpush1.msra.mxu0 %v199
    %311 = vmatprep.subr.mxu0 0.0
    %312 = vmatpush1.msra.mxu0 %v198
    %313 = vmatprep.subr.mxu0 0.0
    %314 = vmatpush1.msra.mxu0 %v197
    %315 = vmatprep.subr.mxu0 0.0
    %316 = vmatpush1.msra.mxu0 %v196
    %317 = vmatprep.subr.mxu0 0.0
    %318 = vmatpush2.msra.mxu0 0.0
    %319 = vmatprep.subr.mxu0 0.0
    %320 = vmatpush2.msra.mxu0 0.0
    %321 = vmatprep.subr.mxu0 0.0
    %322 = vmatpush2.msra.mxu0 0.0
    %323 = vmatprep.subr.mxu0 0.0
    %324 = vmatpush2.msra.mxu0 0.0
    %325 = vmatprep.subr.mxu0 0.0
    %326 = vmatpush2.msra.mxu0 0.0
    %327 = vmatprep.subr.mxu0 0.0
    %328 = vmatpush2.msra.mxu0 0.0
    %329 = vmatprep.subr.mxu0 0.0
    %330 = vmatpush2.msra.mxu0 0.0
    %331 = vmatprep.subr.mxu0 0.0
    %332 = vmatpush2.msra.mxu0 0.0
    %333 = vmatprep.subr.mxu0 0.0
    %334 = vmatpush2.msra.mxu0 0.0
    %335 = vmatprep.subr.mxu0 0.0
    %336 = vmatpush2.msra.mxu0 0.0
    %337 = vmatprep.subr.mxu0 0.0
    %338 = vmatpush2.msra.mxu0 0.0
    %339 = vmatprep.subr.mxu0 0.0
    %340 = vmatpush2.msra.mxu0 0.0
    %341 = vmatprep.subr.mxu0 0.0
    %342 = vmatpush2.msra.mxu0 0.0
    %343 = vmatprep.subr.mxu0 0.0
    %344 = vmatpush2.msra.mxu0 0.0
    %345 = vmatprep.subr.mxu0 0.0
    %346 = vmatpush2.msra.mxu0 0.0
    %347 = vmatprep.subr.mxu0 0.0
    %348 = vmatpush2.msra.mxu0 0.0
    %349 = vmatprep.mubr.f32.mxu0 0.0
    %350 = vmatmul.mubr.f32.gmra.mxu0 %v262
    %v351 = vpop.f32.mrf.mxu0
    %v352 = vadd.f32 %v223, %v351
    %v353 = vpop.f32.mrf.mxu0
    %354 = vmatprep.mubr.f32.mxu0 0.0
    %355 = vmatmul.mubr.f32.gmra.mxu0 %v265
    %v356 = vpop.f32.mrf.mxu0
    %v357 = vadd.f32 %v228, %v356
    %v358 = vpop.f32.mrf.mxu0
    %359 = vmatprep.mubr.f32.mxu0 0.0
    %360 = vmatmul.mubr.f32.gmra.mxu0 %v268
    %v361 = vpop.f32.mrf.mxu0
    %v362 = vadd.f32 %v233, %v361
    %v363 = vpop.f32.mrf.mxu0
    %364 = vmatprep.mubr.f32.mxu0 0.0
    %365 = vmatmul.mubr.f32.gmra.mxu0 %v271
    %v366 = vpop.f32.mrf.mxu0
    %v367 = vadd.f32 %v238, %v366
    %v368 = vpop.f32.mrf.mxu0
    %369 = vmatprep.mubr.f32.mxu0 0.0
    %370 = vmatmul.mubr.f32.gmra.mxu0 %v274
    %v371 = vpop.f32.mrf.mxu0
    %v372 = vadd.f32 %v243, %v371
    %v373 = vpop.f32.mrf.mxu0
    %374 = vmatprep.mubr.f32.mxu0 0.0
    %375 = vmatmul.mubr.f32.gmra.mxu0 %v277
    %v376 = vpop.f32.mrf.mxu0
    %v377 = vadd.f32 %v248, %v376
    %v378 = vpop.f32.mrf.mxu0
    %379 = vmatprep.mubr.f32.mxu0 0.0
    %380 = vmatmul.mubr.f32.gmra.mxu0 %v280
    %v381 = vpop.f32.mrf.mxu0
    %v382 = vadd.f32 %v253, %v381
    %v383 = vpop.f32.mrf.mxu0
    %384 = vmatprep.mubr.f32.mxu0 0.0
    %385 = vmatmul.mubr.f32.gmra.mxu0 %v283
    %v386 = vpop.f32.mrf.mxu0
    %v387 = vadd.f32 %v258, %v386
    %v388 = vpop.f32.mrf.mxu0
    %389 = vdwg.mxu0
    %v390 = vtanh.pop %v352
    %v391 = vtanh.pop %v357
    %v392 = vtanh.pop %v362
    %v393 = vtanh.pop %v367
    %v394 = vtanh.pop %v372
    %v395 = vtanh.pop %v377
    %v396 = vtanh.pop %v382
    %v397 = vtanh.pop %v387
    %s398 = scalar_lea.vmem %s3, 64
    %v399 = vld [vmem:[%s398] sm:$0xff]
    %v400 = vld [vmem:[%s398 + $0x8] sm:$0xff]
    %v401 = vld [vmem:[%s398 + $0x10] sm:$0xff]
    %v402 = vld [vmem:[%s398 + $0x18] sm:$0xff]
    %v403 = vld [vmem:[%s398 + $0x20] sm:$0xff]
    %v404 = vld [vmem:[%s398 + $0x28] sm:$0xff]
    %v405 = vld [vmem:[%s398 + $0x30] sm:$0xff]
    %v406 = vld [vmem:[%s398 + $0x38] sm:$0xff]
    %s407 = scalar_lea.vmem %s4, 64
    %v408 = vld [vmem:[%s407] sm:$0xff]
    %v409 = vld [vmem:[%s407 + $0x8] sm:$0xff]
    %v410 = vld [vmem:[%s407 + $0x10] sm:$0xff]
    %v411 = vld [vmem:[%s407 + $0x18] sm:$0xff]
    %v412 = vld [vmem:[%s407 + $0x20] sm:$0xff]
    %v413 = vld [vmem:[%s407 + $0x28] sm:$0xff]
    %v414 = vld [vmem:[%s407 + $0x30] sm:$0xff]
    %v415 = vld [vmem:[%s407 + $0x38] sm:$0xff]
    %417 = vset.pattern.permute.xlu0 0
    %418 = vperm.xlu0 %417, %v408
    %v419 = vpop.permute.xlu0 %418
    %422 = vset.pattern.permute.xlu0 0
    %423 = vperm.xlu0 %422, %v409
    %v424 = vpop.permute.xlu0 %423
    %427 = vset.pattern.permute.xlu0 0
    %428 = vperm.xlu0 %427, %v410
    %v429 = vpop.permute.xlu0 %428
    %432 = vset.pattern.permute.xlu0 0
    %433 = vperm.xlu0 %432, %v411
    %v434 = vpop.permute.xlu0 %433
    %437 = vset.pattern.permute.xlu0 0
    %438 = vperm.xlu0 %437, %v412
    %v439 = vpop.permute.xlu0 %438
    %442 = vset.pattern.permute.xlu0 0
    %443 = vperm.xlu0 %442, %v413
    %v444 = vpop.permute.xlu0 %443
    %447 = vset.pattern.permute.xlu0 0
    %448 = vperm.xlu0 %447, %v414
    %v449 = vpop.permute.xlu0 %448
    %452 = vset.pattern.permute.xlu0 0
    %453 = vperm.xlu0 %452, %v415
    %v454 = vpop.permute.xlu0 %453
    %v457 = vsel %vm260, %v399, 0
    %v460 = vsel %vm260, %v400, 0
    %v463 = vsel %vm260, %v401, 0
    %v466 = vsel %vm260, %v402, 0
    %v469 = vsel %vm260, %v403, 0
    %v472 = vsel %vm260, %v404, 0
    %v475 = vsel %vm260, %v405, 0
    %v478 = vsel %vm260, %v406, 0
    %480 = vmatprep.subr.mxu0 0.0
    %481 = vmatpush1.msra.mxu0 0.0
    %482 = vmatprep.subr.mxu0 0.0
    %483 = vmatpush1.msra.mxu0 0.0
    %484 = vmatprep.subr.mxu0 0.0
    %485 = vmatpush1.msra.mxu0 0.0
    %486 = vmatprep.subr.mxu0 0.0
    %487 = vmatpush1.msra.mxu0 0.0
    %488 = vmatprep.subr.mxu0 0.0
    %489 = vmatpush1.msra.mxu0 0.0
    %490 = vmatprep.subr.mxu0 0.0
    %491 = vmatpush1.msra.mxu0 0.0
    %492 = vmatprep.subr.mxu0 0.0
    %493 = vmatpush1.msra.mxu0 0.0
    %494 = vmatprep.subr.mxu0 0.0
    %495 = vmatpush1.msra.mxu0 0.0
    %496 = vmatprep.subr.mxu0 0.0
    %497 = vmatpush1.msra.mxu0 %v397
    %498 = vmatprep.subr.mxu0 0.0
    %499 = vmatpush1.msra.mxu0 %v396
    %500 = vmatprep.subr.mxu0 0.0
    %501 = vmatpush1.msra.mxu0 %v395
    %502 = vmatprep.subr.mxu0 0.0
    %503 = vmatpush1.msra.mxu0 %v394
    %504 = vmatprep.subr.mxu0 0.0
    %505 = vmatpush1.msra.mxu0 %v393
    %506 = vmatprep.subr.mxu0 0.0
    %507 = vmatpush1.msra.mxu0 %v392
    %508 = vmatprep.subr.mxu0 0.0
    %509 = vmatpush1.msra.mxu0 %v391
    %510 = vmatprep.subr.mxu0 0.0
    %511 = vmatpush1.msra.mxu0 %v390
    %512 = vmatprep.subr.mxu0 0.0
    %513 = vmatpush2.msra.mxu0 0.0
    %514 = vmatprep.subr.mxu0 0.0
    %515 = vmatpush2.msra.mxu0 0.0
    %516 = vmatprep.subr.mxu0 0.0
    %517 = vmatpush2.msra.mxu0 0.0
    %518 = vmatprep.subr.mxu0 0.0
    %519 = vmatpush2.msra.mxu0 0.0
    %520 = vmatprep.subr.mxu0 0.0
    %521 = vmatpush2.msra.mxu0 0.0
    %522 = vmatprep.subr.mxu0 0.0
    %523 = vmatpush2.msra.mxu0 0.0
    %524 = vmatprep.subr.mxu0 0.0
    %525 = vmatpush2.msra.mxu0 0.0
    %526 = vmatprep.subr.mxu0 0.0
    %527 = vmatpush2.msra.mxu0 0.0
    %528 = vmatprep.subr.mxu0 0.0
    %529 = vmatpush2.msra.mxu0 0.0
    %530 = vmatprep.subr.mxu0 0.0
    %531 = vmatpush2.msra.mxu0 0.0
    %532 = vmatprep.subr.mxu0 0.0
    %533 = vmatpush2.msra.mxu0 0.0
    %534 = vmatprep.subr.mxu0 0.0
    %535 = vmatpush2.msra.mxu0 0.0
    %536 = vmatprep.subr.mxu0 0.0
    %537 = vmatpush2.msra.mxu0 0.0
    %538 = vmatprep.subr.mxu0 0.0
    %539 = vmatpush2.msra.mxu0 0.0
    %540 = vmatprep.subr.mxu0 0.0
    %541 = vmatpush2.msra.mxu0 0.0
    %542 = vmatprep.subr.mxu0 0.0
    %543 = vmatpush2.msra.mxu0 0.0
    %544 = vmatprep.mubr.f32.mxu0 0.0
    %545 = vmatmul.mubr.f32.gmra.mxu0 %v457
    %v546 = vpop.f32.mrf.mxu0
    %v547 = vadd.f32 %v419, %v546
    %v548 = vpop.f32.mrf.mxu0
    %549 = vmatprep.mubr.f32.mxu0 0.0
    %550 = vmatmul.mubr.f32.gmra.mxu0 %v460
    %v551 = vpop.f32.mrf.mxu0
    %v552 = vadd.f32 %v424, %v551
    %v553 = vpop.f32.mrf.mxu0
    %554 = vmatprep.mubr.f32.mxu0 0.0
    %555 = vmatmul.mubr.f32.gmra.mxu0 %v463
    %v556 = vpop.f32.mrf.mxu0
    %v557 = vadd.f32 %v429, %v556
    %v558 = vpop.f32.mrf.mxu0
    %559 = vmatprep.mubr.f32.mxu0 0.0
    %560 = vmatmul.mubr.f32.gmra.mxu0 %v466
    %v561 = vpop.f32.mrf.mxu0
    %v562 = vadd.f32 %v434, %v561
    %v563 = vpop.f32.mrf.mxu0
    %564 = vmatprep.mubr.f32.mxu0 0.0
    %565 = vmatmul.mubr.f32.gmra.mxu0 %v469
    %v566 = vpop.f32.mrf.mxu0
    %v567 = vadd.f32 %v439, %v566
    %v568 = vpop.f32.mrf.mxu0
    %569 = vmatprep.mubr.f32.mxu0 0.0
    %570 = vmatmul.mubr.f32.gmra.mxu0 %v472
    %v571 = vpop.f32.mrf.mxu0
    %v572 = vadd.f32 %v444, %v571
    %v573 = vpop.f32.mrf.mxu0
    %574 = vmatprep.mubr.f32.mxu0 0.0
    %575 = vmatmul.mubr.f32.gmra.mxu0 %v475
    %v576 = vpop.f32.mrf.mxu0
    %v577 = vadd.f32 %v449, %v576
    %v578 = vpop.f32.mrf.mxu0
    %579 = vmatprep.mubr.f32.mxu0 0.0
    %580 = vmatmul.mubr.f32.gmra.mxu0 %v478
    %v581 = vpop.f32.mrf.mxu0
    %v582 = vadd.f32 %v454, %v581
    %v583 = vpop.f32.mrf.mxu0
    %584 = vdwg.mxu0
    %v585 = vtanh.pop %v547
    %v586 = vtanh.pop %v552
    %v587 = vtanh.pop %v557
    %v588 = vtanh.pop %v562
    %v589 = vtanh.pop %v567
    %v590 = vtanh.pop %v572
    %v591 = vtanh.pop %v577
    %v592 = vtanh.pop %v582
    %s593 = scalar_lea.vmem %s3, 128
    %v594 = vld [vmem:[%s593] sm:$0xff]
    %v595 = vld [vmem:[%s593 + $0x8] sm:$0xff]
    %v596 = vld [vmem:[%s593 + $0x10] sm:$0xff]
    %v597 = vld [vmem:[%s593 + $0x18] sm:$0xff]
    %v598 = vld [vmem:[%s593 + $0x20] sm:$0xff]
    %v599 = vld [vmem:[%s593 + $0x28] sm:$0xff]
    %v600 = vld [vmem:[%s593 + $0x30] sm:$0xff]
    %v601 = vld [vmem:[%s593 + $0x38] sm:$0xff]
    %s602 = scalar_lea.vmem %s4, 128
    %v603 = vld [vmem:[%s602] sm:$0xff]
    %v604 = vld [vmem:[%s602 + $0x8] sm:$0xff]
    %v605 = vld [vmem:[%s602 + $0x10] sm:$0xff]
    %v606 = vld [vmem:[%s602 + $0x18] sm:$0xff]
    %v607 = vld [vmem:[%s602 + $0x20] sm:$0xff]
    %v608 = vld [vmem:[%s602 + $0x28] sm:$0xff]
    %v609 = vld [vmem:[%s602 + $0x30] sm:$0xff]
    %v610 = vld [vmem:[%s602 + $0x38] sm:$0xff]
    %612 = vset.pattern.permute.xlu0 0
    %613 = vperm.xlu0 %612, %v603
    %v614 = vpop.permute.xlu0 %613
    %617 = vset.pattern.permute.xlu0 0
    %618 = vperm.xlu0 %617, %v604
    %v619 = vpop.permute.xlu0 %618
    %622 = vset.pattern.permute.xlu0 0
    %623 = vperm.xlu0 %622, %v605
    %v624 = vpop.permute.xlu0 %623
    %627 = vset.pattern.permute.xlu0 0
    %628 = vperm.xlu0 %627, %v606
    %v629 = vpop.permute.xlu0 %628
    %632 = vset.pattern.permute.xlu0 0
    %633 = vperm.xlu0 %632, %v607
    %v634 = vpop.permute.xlu0 %633
    %637 = vset.pattern.permute.xlu0 0
    %638 = vperm.xlu0 %637, %v608
    %v639 = vpop.permute.xlu0 %638
    %642 = vset.pattern.permute.xlu0 0
    %643 = vperm.xlu0 %642, %v609
    %v644 = vpop.permute.xlu0 %643
    %647 = vset.pattern.permute.xlu0 0
    %648 = vperm.xlu0 %647, %v610
    %v649 = vpop.permute.xlu0 %648
    %v652 = vsel %vm260, %v594, 0
    %v655 = vsel %vm260, %v595, 0
    %v658 = vsel %vm260, %v596, 0
    %v661 = vsel %vm260, %v597, 0
    %v664 = vsel %vm260, %v598, 0
    %v667 = vsel %vm260, %v599, 0
    %v670 = vsel %vm260, %v600, 0
    %v673 = vsel %vm260, %v601, 0
    %675 = vmatprep.subr.mxu0 0.0
    %676 = vmatpush1.msra.mxu0 0.0
    %677 = vmatprep.subr.mxu0 0.0
    %678 = vmatpush1.msra.mxu0 0.0
    %679 = vmatprep.subr.mxu0 0.0
    %680 = vmatpush1.msra.mxu0 0.0
    %681 = vmatprep.subr.mxu0 0.0
    %682 = vmatpush1.msra.mxu0 0.0
    %683 = vmatprep.subr.mxu0 0.0
    %684 = vmatpush1.msra.mxu0 0.0
    %685 = vmatprep.subr.mxu0 0.0
    %686 = vmatpush1.msra.mxu0 0.0
    %687 = vmatprep.subr.mxu0 0.0
    %688 = vmatpush1.msra.mxu0 0.0
    %689 = vmatprep.subr.mxu0 0.0
    %690 = vmatpush1.msra.mxu0 0.0
    %691 = vmatprep.subr.mxu0 0.0
    %692 = vmatpush1.msra.mxu0 %v592
    %693 = vmatprep.subr.mxu0 0.0
    %694 = vmatpush1.msra.mxu0 %v591
    %695 = vmatprep.subr.mxu0 0.0
    %696 = vmatpush1.msra.mxu0 %v590
    %697 = vmatprep.subr.mxu0 0.0
    %698 = vmatpush1.msra.mxu0 %v589
    %699 = vmatprep.subr.mxu0 0.0
    %700 = vmatpush1.msra.mxu0 %v588
    %701 = vmatprep.subr.mxu0 0.0
    %702 = vmatpush1.msra.mxu0 %v587
    %703 = vmatprep.subr.mxu0 0.0
    %704 = vmatpush1.msra.mxu0 %v586
    %705 = vmatprep.subr.mxu0 0.0
    %706 = vmatpush1.msra.mxu0 %v585
    %707 = vmatprep.subr.mxu0 0.0
    %708 = vmatpush2.msra.mxu0 0.0
    %709 = vmatprep.subr.mxu0 0.0
    %710 = vmatpush2.msra.mxu0 0.0
    %711 = vmatprep.subr.mxu0 0.0
    %712 = vmatpush2.msra.mxu0 0.0
    %713 = vmatprep.subr.mxu0 0.0
    %714 = vmatpush2.msra.mxu0 0.0
    %715 = vmatprep.subr.mxu0 0.0
    %716 = vmatpush2.msra.mxu0 0.0
    %717 = vmatprep.subr.mxu0 0.0
    %718 = vmatpush2.msra.mxu0 0.0
    %719 = vmatprep.subr.mxu0 0.0
    %720 = vmatpush2.msra.mxu0 0.0
    %721 = vmatprep.subr.mxu0 0.0
    %722 = vmatpush2.msra.mxu0 0.0
    %723 = vmatprep.subr.mxu0 0.0
    %724 = vmatpush2.msra.mxu0 0.0
    %725 = vmatprep.subr.mxu0 0.0
    %726 = vmatpush2.msra.mxu0 0.0
    %727 = vmatprep.subr.mxu0 0.0
    %728 = vmatpush2.msra.mxu0 0.0
    %729 = vmatprep.subr.mxu0 0.0
    %730 = vmatpush2.msra.mxu0 0.0
    %731 = vmatprep.subr.mxu0 0.0
    %732 = vmatpush2.msra.mxu0 0.0
    %733 = vmatprep.subr.mxu0 0.0
    %734 = vmatpush2.msra.mxu0 0.0
    %735 = vmatprep.subr.mxu0 0.0
    %736 = vmatpush2.msra.mxu0 0.0
    %737 = vmatprep.subr.mxu0 0.0
    %738 = vmatpush2.msra.mxu0 0.0
    %739 = vmatprep.mubr.f32.mxu0 0.0
    %740 = vmatmul.mubr.f32.gmra.mxu0 %v652
    %v741 = vpop.f32.mrf.mxu0
    %v742 = vadd.f32 %v614, %v741
    %v743 = vpop.f32.mrf.mxu0
    %744 = vmatprep.mubr.f32.mxu0 0.0
    %745 = vmatmul.mubr.f32.gmra.mxu0 %v655
    %v746 = vpop.f32.mrf.mxu0
    %v747 = vadd.f32 %v619, %v746
    %v748 = vpop.f32.mrf.mxu0
    %749 = vmatprep.mubr.f32.mxu0 0.0
    %750 = vmatmul.mubr.f32.gmra.mxu0 %v658
    %v751 = vpop.f32.mrf.mxu0
    %v752 = vadd.f32 %v624, %v751
    %v753 = vpop.f32.mrf.mxu0
    %754 = vmatprep.mubr.f32.mxu0 0.0
    %755 = vmatmul.mubr.f32.gmra.mxu0 %v661
    %v756 = vpop.f32.mrf.mxu0
    %v757 = vadd.f32 %v629, %v756
    %v758 = vpop.f32.mrf.mxu0
    %759 = vmatprep.mubr.f32.mxu0 0.0
    %760 = vmatmul.mubr.f32.gmra.mxu0 %v664
    %v761 = vpop.f32.mrf.mxu0
    %v762 = vadd.f32 %v634, %v761
    %v763 = vpop.f32.mrf.mxu0
    %764 = vmatprep.mubr.f32.mxu0 0.0
    %765 = vmatmul.mubr.f32.gmra.mxu0 %v667
    %v766 = vpop.f32.mrf.mxu0
    %v767 = vadd.f32 %v639, %v766
    %v768 = vpop.f32.mrf.mxu0
    %769 = vmatprep.mubr.f32.mxu0 0.0
    %770 = vmatmul.mubr.f32.gmra.mxu0 %v670
    %v771 = vpop.f32.mrf.mxu0
    %v772 = vadd.f32 %v644, %v771
    %v773 = vpop.f32.mrf.mxu0
    %774 = vmatprep.mubr.f32.mxu0 0.0
    %775 = vmatmul.mubr.f32.gmra.mxu0 %v673
    %v776 = vpop.f32.mrf.mxu0
    %v777 = vadd.f32 %v649, %v776
    %v778 = vpop.f32.mrf.mxu0
    %779 = vdwg.mxu0
    %v780 = vtanh.pop %v742
    %v781 = vtanh.pop %v747
    %v782 = vtanh.pop %v752
    %v783 = vtanh.pop %v757
    %v784 = vtanh.pop %v762
    %v785 = vtanh.pop %v767
    %v786 = vtanh.pop %v772
    %v787 = vtanh.pop %v777
    %s788 = scalar_lea.vmem %s3, 192
    %v789 = vld [vmem:[%s788] sm:$0xff]
    %v790 = vld [vmem:[%s788 + $0x8] sm:$0xff]
    %v791 = vld [vmem:[%s788 + $0x10] sm:$0xff]
    %v792 = vld [vmem:[%s788 + $0x18] sm:$0xff]
    %v793 = vld [vmem:[%s788 + $0x20] sm:$0xff]
    %v794 = vld [vmem:[%s788 + $0x28] sm:$0xff]
    %v795 = vld [vmem:[%s788 + $0x30] sm:$0xff]
    %v796 = vld [vmem:[%s788 + $0x38] sm:$0xff]
    %s797 = scalar_lea.vmem %s4, 192
    %v798 = vld [vmem:[%s797] sm:$0xff]
    %v799 = vld [vmem:[%s797 + $0x8] sm:$0xff]
    %v800 = vld [vmem:[%s797 + $0x10] sm:$0xff]
    %v801 = vld [vmem:[%s797 + $0x18] sm:$0xff]
    %v802 = vld [vmem:[%s797 + $0x20] sm:$0xff]
    %v803 = vld [vmem:[%s797 + $0x28] sm:$0xff]
    %v804 = vld [vmem:[%s797 + $0x30] sm:$0xff]
    %v805 = vld [vmem:[%s797 + $0x38] sm:$0xff]
    %807 = vset.pattern.permute.xlu0 0
    %808 = vperm.xlu0 %807, %v798
    %v809 = vpop.permute.xlu0 %808
    %812 = vset.pattern.permute.xlu0 0
    %813 = vperm.xlu0 %812, %v799
    %v814 = vpop.permute.xlu0 %813
    %817 = vset.pattern.permute.xlu0 0
    %818 = vperm.xlu0 %817, %v800
    %v819 = vpop.permute.xlu0 %818
    %822 = vset.pattern.permute.xlu0 0
    %823 = vperm.xlu0 %822, %v801
    %v824 = vpop.permute.xlu0 %823
    %827 = vset.pattern.permute.xlu0 0
    %828 = vperm.xlu0 %827, %v802
    %v829 = vpop.permute.xlu0 %828
    %832 = vset.pattern.permute.xlu0 0
    %833 = vperm.xlu0 %832, %v803
    %v834 = vpop.permute.xlu0 %833
    %837 = vset.pattern.permute.xlu0 0
    %838 = vperm.xlu0 %837, %v804
    %v839 = vpop.permute.xlu0 %838
    %842 = vset.pattern.permute.xlu0 0
    %843 = vperm.xlu0 %842, %v805
    %v844 = vpop.permute.xlu0 %843
    %v847 = vsel %vm260, %v789, 0
    %v850 = vsel %vm260, %v790, 0
    %v853 = vsel %vm260, %v791, 0
    %v856 = vsel %vm260, %v792, 0
    %v859 = vsel %vm260, %v793, 0
    %v862 = vsel %vm260, %v794, 0
    %v865 = vsel %vm260, %v795, 0
    %v868 = vsel %vm260, %v796, 0
    %870 = vmatprep.subr.mxu0 0.0
    %871 = vmatpush1.msra.mxu0 0.0
    %872 = vmatprep.subr.mxu0 0.0
    %873 = vmatpush1.msra.mxu0 0.0
    %874 = vmatprep.subr.mxu0 0.0
    %875 = vmatpush1.msra.mxu0 0.0
    %876 = vmatprep.subr.mxu0 0.0
    %877 = vmatpush1.msra.mxu0 0.0
    %878 = vmatprep.subr.mxu0 0.0
    %879 = vmatpush1.msra.mxu0 0.0
    %880 = vmatprep.subr.mxu0 0.0
    %881 = vmatpush1.msra.mxu0 0.0
    %882 = vmatprep.subr.mxu0 0.0
    %883 = vmatpush1.msra.mxu0 0.0
    %884 = vmatprep.subr.mxu0 0.0
    %885 = vmatpush1.msra.mxu0 0.0
    %886 = vmatprep.subr.mxu0 0.0
    %887 = vmatpush1.msra.mxu0 %v787
    %888 = vmatprep.subr.mxu0 0.0
    %889 = vmatpush1.msra.mxu0 %v786
    %890 = vmatprep.subr.mxu0 0.0
    %891 = vmatpush1.msra.mxu0 %v785
    %892 = vmatprep.subr.mxu0 0.0
    %893 = vmatpush1.msra.mxu0 %v784
    %894 = vmatprep.subr.mxu0 0.0
    %895 = vmatpush1.msra.mxu0 %v783
    %896 = vmatprep.subr.mxu0 0.0
    %897 = vmatpush1.msra.mxu0 %v782
    %898 = vmatprep.subr.mxu0 0.0
    %899 = vmatpush1.msra.mxu0 %v781
    %900 = vmatprep.subr.mxu0 0.0
    %901 = vmatpush1.msra.mxu0 %v780
    %902 = vmatprep.subr.mxu0 0.0
    %903 = vmatpush2.msra.mxu0 0.0
    %904 = vmatprep.subr.mxu0 0.0
    %905 = vmatpush2.msra.mxu0 0.0
    %906 = vmatprep.subr.mxu0 0.0
    %907 = vmatpush2.msra.mxu0 0.0
    %908 = vmatprep.subr.mxu0 0.0
    %909 = vmatpush2.msra.mxu0 0.0
    %910 = vmatprep.subr.mxu0 0.0
    %911 = vmatpush2.msra.mxu0 0.0
    %912 = vmatprep.subr.mxu0 0.0
    %913 = vmatpush2.msra.mxu0 0.0
    %914 = vmatprep.subr.mxu0 0.0
    %915 = vmatpush2.msra.mxu0 0.0
    %916 = vmatprep.subr.mxu0 0.0
    %917 = vmatpush2.msra.mxu0 0.0
    %918 = vmatprep.subr.mxu0 0.0
    %919 = vmatpush2.msra.mxu0 0.0
    %920 = vmatprep.subr.mxu0 0.0
    %921 = vmatpush2.msra.mxu0 0.0
    %922 = vmatprep.subr.mxu0 0.0
    %923 = vmatpush2.msra.mxu0 0.0
    %924 = vmatprep.subr.mxu0 0.0
    %925 = vmatpush2.msra.mxu0 0.0
    %926 = vmatprep.subr.mxu0 0.0
    %927 = vmatpush2.msra.mxu0 0.0
    %928 = vmatprep.subr.mxu0 0.0
    %929 = vmatpush2.msra.mxu0 0.0
    %930 = vmatprep.subr.mxu0 0.0
    %931 = vmatpush2.msra.mxu0 0.0
    %932 = vmatprep.subr.mxu0 0.0
    %933 = vmatpush2.msra.mxu0 0.0
    %934 = vmatprep.mubr.f32.mxu0 0.0
    %935 = vmatmul.mubr.f32.gmra.mxu0 %v847
    %v936 = vpop.f32.mrf.mxu0
    %v937 = vadd.f32 %v809, %v936
    %v938 = vpop.f32.mrf.mxu0
    %939 = vmatprep.mubr.f32.mxu0 0.0
    %940 = vmatmul.mubr.f32.gmra.mxu0 %v850
    %v941 = vpop.f32.mrf.mxu0
    %v942 = vadd.f32 %v814, %v941
    %v943 = vpop.f32.mrf.mxu0
    %944 = vmatprep.mubr.f32.mxu0 0.0
    %945 = vmatmul.mubr.f32.gmra.mxu0 %v853
    %v946 = vpop.f32.mrf.mxu0
    %v947 = vadd.f32 %v819, %v946
    %v948 = vpop.f32.mrf.mxu0
    %949 = vmatprep.mubr.f32.mxu0 0.0
    %950 = vmatmul.mubr.f32.gmra.mxu0 %v856
    %v951 = vpop.f32.mrf.mxu0
    %v952 = vadd.f32 %v824, %v951
    %v953 = vpop.f32.mrf.mxu0
    %954 = vmatprep.mubr.f32.mxu0 0.0
    %955 = vmatmul.mubr.f32.gmra.mxu0 %v859
    %v956 = vpop.f32.mrf.mxu0
    %v957 = vadd.f32 %v829, %v956
    %v958 = vpop.f32.mrf.mxu0
    %959 = vmatprep.mubr.f32.mxu0 0.0
    %960 = vmatmul.mubr.f32.gmra.mxu0 %v862
    %v961 = vpop.f32.mrf.mxu0
    %v962 = vadd.f32 %v834, %v961
    %v963 = vpop.f32.mrf.mxu0
    %964 = vmatprep.mubr.f32.mxu0 0.0
    %965 = vmatmul.mubr.f32.gmra.mxu0 %v865
    %v966 = vpop.f32.mrf.mxu0
    %v967 = vadd.f32 %v839, %v966
    %v968 = vpop.f32.mrf.mxu0
    %969 = vmatprep.mubr.f32.mxu0 0.0
    %970 = vmatmul.mubr.f32.gmra.mxu0 %v868
    %v971 = vpop.f32.mrf.mxu0
    %v972 = vadd.f32 %v844, %v971
    %v973 = vpop.f32.mrf.mxu0
    %974 = vdwg.mxu0
    %v975 = vtanh.pop %v937
    %v976 = vtanh.pop %v942
    %v977 = vtanh.pop %v947
    %v978 = vtanh.pop %v952
    %v979 = vtanh.pop %v957
    %v980 = vtanh.pop %v962
    %v981 = vtanh.pop %v967
    %v982 = vtanh.pop %v972
    %v983 = vld [vmem:[%s5] sm:$0xff]
    %v984 = vld [vmem:[%s6] sm:$0xff]
    %986 = vset.pattern.permute.xlu0 0
    %987 = vperm.xlu0 %986, %v984
    %v988 = vpop.permute.xlu0 %987
    %v991 = vsel %vm260, %v983, 0
    %993 = vmatprep.subr.mxu0 0.0
    %994 = vmatpush1.msra.mxu0 0.0
    %995 = vmatprep.subr.mxu0 0.0
    %996 = vmatpush1.msra.mxu0 0.0
    %997 = vmatprep.subr.mxu0 0.0
    %998 = vmatpush1.msra.mxu0 0.0
    %999 = vmatprep.subr.mxu0 0.0
    %1000 = vmatpush1.msra.mxu0 0.0
    %1001 = vmatprep.subr.mxu0 0.0
    %1002 = vmatpush1.msra.mxu0 0.0
    %1003 = vmatprep.subr.mxu0 0.0
    %1004 = vmatpush1.msra.mxu0 0.0
    %1005 = vmatprep.subr.mxu0 0.0
    %1006 = vmatpush1.msra.mxu0 0.0
    %1007 = vmatprep.subr.mxu0 0.0
    %1008 = vmatpush1.msra.mxu0 0.0
    %1009 = vmatprep.subr.mxu0 0.0
    %1010 = vmatpush1.msra.mxu0 %v982
    %1011 = vmatprep.subr.mxu0 0.0
    %1012 = vmatpush1.msra.mxu0 %v981
    %1013 = vmatprep.subr.mxu0 0.0
    %1014 = vmatpush1.msra.mxu0 %v980
    %1015 = vmatprep.subr.mxu0 0.0
    %1016 = vmatpush1.msra.mxu0 %v979
    %1017 = vmatprep.subr.mxu0 0.0
    %1018 = vmatpush1.msra.mxu0 %v978
    %1019 = vmatprep.subr.mxu0 0.0
    %1020 = vmatpush1.msra.mxu0 %v977
    %1021 = vmatprep.subr.mxu0 0.0
    %1022 = vmatpush1.msra.mxu0 %v976
    %1023 = vmatprep.subr.mxu0 0.0
    %1024 = vmatpush1.msra.mxu0 %v975
    %1025 = vmatprep.subr.mxu0 0.0
    %1026 = vmatpush2.msra.mxu0 0.0
    %1027 = vmatprep.subr.mxu0 0.0
    %1028 = vmatpush2.msra.mxu0 0.0
    %1029 = vmatprep.subr.mxu0 0.0
    %1030 = vmatpush2.msra.mxu0 0.0
    %1031 = vmatprep.subr.mxu0 0.0
    %1032 = vmatpush2.msra.mxu0 0.0
    %1033 = vmatprep.subr.mxu0 0.0
    %1034 = vmatpush2.msra.mxu0 0.0
    %1035 = vmatprep.subr.mxu0 0.0
    %1036 = vmatpush2.msra.mxu0 0.0
    %1037 = vmatprep.subr.mxu0 0.0
    %1038 = vmatpush2.msra.mxu0 0.0
    %1039 = vmatprep.subr.mxu0 0.0
    %1040 = vmatpush2.msra.mxu0 0.0
    %1041 = vmatprep.subr.mxu0 0.0
    %1042 = vmatpush2.msra.mxu0 0.0
    %1043 = vmatprep.subr.mxu0 0.0
    %1044 = vmatpush2.msra.mxu0 0.0
    %1045 = vmatprep.subr.mxu0 0.0
    %1046 = vmatpush2.msra.mxu0 0.0
    %1047 = vmatprep.subr.mxu0 0.0
    %1048 = vmatpush2.msra.mxu0 0.0
    %1049 = vmatprep.subr.mxu0 0.0
    %1050 = vmatpush2.msra.mxu0 0.0
    %1051 = vmatprep.subr.mxu0 0.0
    %1052 = vmatpush2.msra.mxu0 0.0
    %1053 = vmatprep.subr.mxu0 0.0
    %1054 = vmatpush2.msra.mxu0 0.0
    %1055 = vmatprep.subr.mxu0 0.0
    %1056 = vmatpush2.msra.mxu0 0.0
    %1057 = vmatprep.mubr.f32.mxu0 0.0
    %1058 = vmatmul.mubr.f32.gmra.mxu0 %v991
    %v1059 = vpop.f32.mrf.mxu0
    %v1060 = vadd.f32 %v988, %v1059
    %v1061 = vpop.f32.mrf.mxu0
    %1062 = vdwg.mxu0
    %1063 = vst [vmem:[#allocation2] sm:$0xff] %v1060
    // Predicated region
    $region30: #{tpu_custom_call.1} parent=1 // pred_check
      _
    $region31: #{tpu_custom_call.1} parent=1 // pred_check_branch
      %1065 = sbr.rel (0) target = $region33
    $region32: #{tpu_custom_call.1} parent=1 // pred_region
      %s1067 = ssub.s32 128, 128
      %1068 = vsyncadd [#allocation3], %s1067
      %s1070 = sshll.u32 [#allocation2], 4
      %s1071 = int_to_ptr.vmem [resolvable:$true] %s1070
      %1073 = dma.vmem_to_hbm [thread:$0]  %s1071, 128, %s7, [#allocation3]
    $region33: #{tpu_custom_call.1} parent=1 // pred_fallthru
      _
    // Predicated region
    $region34: #{tpu_custom_call.1} parent=1 // pred_check
      _
    $region35: #{tpu_custom_call.1} parent=1 // pred_check_branch
      %1075 = sbr.rel (0) target = $region37
    $region36: #{tpu_custom_call.1} parent=1 // pred_region
      %1076 = dma.done [#allocation3], 128
    $region37: #{tpu_custom_call.1} parent=1 // pred_fallthru
      _
    %1077 = vsyncpa [#allocation3], 1

</llo_original>
